<compile_context>
chip_gen: v7x
topology: tpu7x:2x2x1
jax: 0.10.0
libtpu: 0.0.40
codegen_flags: <defaults>
</compile_context>

<pallas_src>
import functools
import math

import jax
import jax.numpy as jnp
from jax.experimental import pallas as pl
from jax.experimental.pallas import tpu as pltpu

_LANE = 128
_SUBLANE = 8


def _round_up(n, m):
    return ((n + m - 1) // m) * m


def policy_kernel(x_ref, w1_ref, b1_ref, wh_ref, bh_ref, eps_ref, out_ref,
                  *, action_bound, a_pad):
    x = x_ref[...]

    # fc1 + ReLU (hidden padded to a lane multiple; pad columns are exact zeros)
    h = jnp.dot(x, w1_ref[...], preferred_element_type=jnp.float32) + b1_ref[...]
    h = jnp.maximum(h, 0.0)

    # Fused mu|std head: one matmul over the concatenated (hidden_pad, 2*a_pad)
    # weight, then 128-aligned static slices.
    head = jnp.dot(h, wh_ref[...], preferred_element_type=jnp.float32) + bh_ref[...]
    mu = head[:, :a_pad]
    std_pre = head[:, a_pad:]

    # Numerically stable softplus with a single exp + log1p per element.
    std = jnp.maximum(std_pre, 0.0) + jnp.log1p(jnp.exp(-jnp.abs(std_pre)))

    # rsample: mu + std * eps
    eps = eps_ref[...]
    sample = mu + std * eps
    action_t = jnp.tanh(sample)

    # Normal(mu, std).log_prob(sample): (sample - mu)/std == eps exactly, so
    #   log_prob = -0.5*eps^2 - log(std) - 0.5*log(2*pi)
    # tanh log-det correction; log(action_bound) and the Gaussian constant are
    # folded into one subtract.
    const = 0.5 * math.log(2.0 * math.pi) + math.log(action_bound)
    log_prob = (-0.5 * (eps * eps)
                - jnp.log(std)
                - jnp.log(1.0 - action_t * action_t + 1e-07)
                - const)

    # Single lane-dense output slab: [action | log_prob], 128-aligned halves.
    out_ref[:, :a_pad] = action_t * action_bound
    out_ref[:, a_pad:] = log_prob


def pack_params(params):
    """One-time packing: transpose, fuse mu|std head, zero-pad to lane tiles."""
    w1, b1 = params["w1"], params["b1"]
    w_mu, b_mu = params["w_mu"], params["b_mu"]
    w_std, b_std = params["w_std"], params["b_std"]
    hidden_dim, state_dim = w1.shape
    action_dim = w_mu.shape[0]

    h_pad = _round_up(hidden_dim, _LANE)
    a_pad = _round_up(action_dim, _LANE)

    w1_p = jnp.zeros((state_dim, h_pad), jnp.float32).at[:, :hidden_dim].set(w1.T)
    b1_p = jnp.zeros((1, h_pad), jnp.float32).at[:, :hidden_dim].set(b1)

    wh_p = jnp.zeros((h_pad, 2 * a_pad), jnp.float32)
    wh_p = wh_p.at[:hidden_dim, :action_dim].set(w_mu.T)
    wh_p = wh_p.at[:hidden_dim, a_pad:a_pad + action_dim].set(w_std.T)
    bh_p = jnp.zeros((1, 2 * a_pad), jnp.float32)
    bh_p = bh_p.at[:, :action_dim].set(b_mu)
    bh_p = bh_p.at[:, a_pad:a_pad + action_dim].set(b_std)

    return {"w1": w1_p, "b1": b1_p, "w_head": wh_p, "b_head": bh_p,
            "state_dim": state_dim, "hidden_pad": h_pad,
            "action_dim": action_dim, "action_pad": a_pad}


def policy_net_forward(x, packed, eps, action_bound):
    B, state_dim = x.shape
    action_dim = packed["action_dim"]
    a_pad = packed["action_pad"]
    h_pad = packed["hidden_pad"]

    # Batch tile: multiple of the sublane width; large enough to amortize the
    # ~0.35us per-grid-step overhead, small enough for v7x's 64 MiB VMEM.
    tb = min(256, _round_up(B, _SUBLANE))
    b_pad = _round_up(B, tb)

    x_p = x if b_pad == B else jnp.pad(x, ((0, b_pad - B), (0, 0)))
    eps_p = jnp.zeros((b_pad, a_pad), jnp.float32).at[:B, :action_dim].set(eps)

    kernel = functools.partial(policy_kernel,
                               action_bound=float(action_bound),
                               a_pad=a_pad)

    out = pl.pallas_call(
        kernel,
        out_shape=jax.ShapeDtypeStruct((b_pad, 2 * a_pad), jnp.float32),
        grid=(b_pad // tb,),
        in_specs=[
            pl.BlockSpec((tb, state_dim), lambda i: (i, 0)),        # x tile
            pl.BlockSpec((state_dim, h_pad), lambda i: (0, 0)),     # w1 (resident)
            pl.BlockSpec((1, h_pad), lambda i: (0, 0)),             # b1
            pl.BlockSpec((h_pad, 2 * a_pad), lambda i: (0, 0)),     # fused head W
            pl.BlockSpec((1, 2 * a_pad), lambda i: (0, 0)),         # fused head b
            pl.BlockSpec((tb, a_pad), lambda i: (i, 0)),            # eps tile
        ],
        out_specs=pl.BlockSpec((tb, 2 * a_pad), lambda i: (i, 0)),
        compiler_params=pltpu.CompilerParams(
            dimension_semantics=("parallel",)),
    )(x_p, packed["w1"], packed["b1"], packed["w_head"], packed["b_head"], eps_p)

    action = out[:B, :action_dim]
    log_prob = out[:B, a_pad:a_pad + action_dim]
    return action, log_prob


def init_params(key, state_dim, hidden_dim, action_dim):
    # Deterministic init mimicking PyTorch Linear (uniform +-1/sqrt(fan_in)).
    ks = jax.random.split(key, 6)

    def lin(kw, kb, out_f, in_f):
        bound = 1.0 / math.sqrt(in_f)
        w = jax.random.uniform(kw, (out_f, in_f), jnp.float32, -bound, bound)
        b = jax.random.uniform(kb, (out_f,), jnp.float32, -bound, bound)
        return w, b

    w1, b1 = lin(ks[0], ks[1], hidden_dim, state_dim)
    w_mu, b_mu = lin(ks[2], ks[3], action_dim, hidden_dim)
    w_std, b_std = lin(ks[4], ks[5], action_dim, hidden_dim)
    return {"w1": w1, "b1": b1,
            "w_mu": w_mu, "b_mu": b_mu,
            "w_std": w_std, "b_std": b_std}


if __name__ == "__main__":
    B, state_dim, hidden_dim, action_dim = 2, 16, 32, 8
    action_bound = 2.0

    key = jax.random.PRNGKey(0)
    k_param, k_x, k_eps = jax.random.split(key, 3)

    params = init_params(k_param, state_dim, hidden_dim, action_dim)
    packed = pack_params(params)   # one-time packing, not per-call

    x = jax.random.normal(k_x, (B, state_dim), jnp.float32)
    eps = jax.random.normal(k_eps, (B, action_dim), jnp.float32)

    action, log_prob = policy_net_forward(x, packed, eps, action_bound)
    jax.block_until_ready((action, log_prob))

    # Pure-JAX reference check (matches the PyTorch forward exactly).
    h = jax.nn.relu(x @ params["w1"].T + params["b1"])
    mu = h @ params["w_mu"].T + params["b_mu"]
    std = jax.nn.softplus(h @ params["w_std"].T + params["b_std"])
    sample = mu + std * eps
    ref_lp = (-0.5 * ((sample - mu) / std) ** 2 - jnp.log(std)
              - 0.5 * math.log(2.0 * math.pi))
    a_t = jnp.tanh(sample)
    ref_lp = ref_lp - jnp.log(1.0 - a_t ** 2 + 1e-07) - math.log(action_bound)
    ref_action = a_t * action_bound

    assert jnp.allclose(action, ref_action, atol=1e-4, rtol=1e-4), (
        float(jnp.max(jnp.abs(action - ref_action))))
    assert jnp.allclose(log_prob, ref_lp, atol=1e-4, rtol=1e-4), (
        float(jnp.max(jnp.abs(log_prob - ref_lp))))

    print("KERNEL_OK")
</pallas_src>

<mosaic_0001>
module attributes {stable_mosaic.version = 11 : i64} {
  func.func @policy_kernel(%arg0: i32, %arg1: memref<8x16xf32, #tpu.memory_space<vmem>>, %arg2: memref<16x128xf32, #tpu.memory_space<vmem>>, %arg3: memref<1x128xf32, #tpu.memory_space<vmem>>, %arg4: memref<128x256xf32, #tpu.memory_space<vmem>>, %arg5: memref<1x256xf32, #tpu.memory_space<vmem>>, %arg6: memref<8x128xf32, #tpu.memory_space<vmem>>, %arg7: memref<8x256xf32, #tpu.memory_space<vmem>>) attributes {dimension_semantics = [#tpu.dimension_semantics<parallel>], iteration_bounds = array<i64: 1>, scalar_prefetch = 0 : i64, scratch_operands = 0 : i64, tpu.core_type = #tpu.core_type<tc>, window_params = [{transform_indices = @transform_0, window_bounds = array<i64: 8, 16>}, {pipeline_mode = #tpu.pipeline_mode<synchronous>, transform_indices = @transform_1, window_bounds = array<i64: 16, 128>}, {pipeline_mode = #tpu.pipeline_mode<synchronous>, transform_indices = @transform_2, window_bounds = array<i64: 1, 128>}, {pipeline_mode = #tpu.pipeline_mode<synchronous>, transform_indices = @transform_3, window_bounds = array<i64: 128, 256>}, {pipeline_mode = #tpu.pipeline_mode<synchronous>, transform_indices = @transform_4, window_bounds = array<i64: 1, 256>}, {transform_indices = @transform_5, window_bounds = array<i64: 8, 128>}, {transform_indices = @transform_6, window_bounds = array<i64: 8, 256>}]} {
    %c0 = arith.constant 0 : index
    %c0_0 = arith.constant 0 : index
    %0 = vector.load %arg1[%c0, %c0_0] : memref<8x16xf32, #tpu.memory_space<vmem>>, vector<8x16xf32>
    %c0_1 = arith.constant 0 : index
    %c0_2 = arith.constant 0 : index
    %1 = vector.load %arg2[%c0_1, %c0_2] : memref<16x128xf32, #tpu.memory_space<vmem>>, vector<16x128xf32>
    %cst = arith.constant dense<0.000000e+00> : vector<8x128xf32>
    %2 = tpu.matmul %0, %1, %cst {dimension_numbers = #tpu.dot_dimension_numbers<[1], [0], [0], [1], [0, 0, 1, 1], [], []>} : vector<8x16xf32>, vector<16x128xf32>, vector<8x128xf32> -> vector<8x128xf32>
    %c0_3 = arith.constant 0 : index
    %c0_4 = arith.constant 0 : index
    %3 = vector.load %arg3[%c0_3, %c0_4] : memref<1x128xf32, #tpu.memory_space<vmem>>, vector<1x128xf32>
    %4 = vector.broadcast %3 : vector<1x128xf32> to vector<8x128xf32>
    %5 = arith.addf %2, %4 : vector<8x128xf32>
    %cst_5 = arith.constant 0.000000e+00 : f32
    %6 = vector.broadcast %cst_5 : f32 to vector<8x128xf32>
    %7 = arith.maximumf %5, %6 : vector<8x128xf32>
    %c0_6 = arith.constant 0 : index
    %c0_7 = arith.constant 0 : index
    %8 = vector.load %arg4[%c0_6, %c0_7] : memref<128x256xf32, #tpu.memory_space<vmem>>, vector<128x256xf32>
    %cst_8 = arith.constant dense<0.000000e+00> : vector<8x256xf32>
    %9 = tpu.matmul %7, %8, %cst_8 {dimension_numbers = #tpu.dot_dimension_numbers<[1], [0], [0], [1], [0, 0, 1, 1], [], []>} : vector<8x128xf32>, vector<128x256xf32>, vector<8x256xf32> -> vector<8x256xf32>
    %c0_9 = arith.constant 0 : index
    %c0_10 = arith.constant 0 : index
    %10 = vector.load %arg5[%c0_9, %c0_10] : memref<1x256xf32, #tpu.memory_space<vmem>>, vector<1x256xf32>
    %11 = vector.broadcast %10 : vector<1x256xf32> to vector<8x256xf32>
    %12 = arith.addf %9, %11 : vector<8x256xf32>
    %13 = vector.extract_strided_slice %12 {offsets = [0, 0], sizes = [8, 128], strides = [1, 1]} : vector<8x256xf32> to vector<8x128xf32>
    %14 = vector.extract_strided_slice %12 {offsets = [0, 128], sizes = [8, 128], strides = [1, 1]} : vector<8x256xf32> to vector<8x128xf32>
    %cst_11 = arith.constant 0.000000e+00 : f32
    %15 = vector.broadcast %cst_11 : f32 to vector<8x128xf32>
    %16 = arith.maximumf %14, %15 : vector<8x128xf32>
    %17 = math.absf %14 : vector<8x128xf32>
    %cst_12 = arith.constant 0.000000e+00 : f32
    %18 = vector.broadcast %cst_12 : f32 to vector<8x128xf32>
    %19 = arith.subf %18, %17 : vector<8x128xf32>
    %20 = math.exp %19 : vector<8x128xf32>
    %21 = math.log1p %20 : vector<8x128xf32>
    %22 = arith.addf %16, %21 : vector<8x128xf32>
    %c0_13 = arith.constant 0 : index
    %c0_14 = arith.constant 0 : index
    %23 = vector.load %arg6[%c0_13, %c0_14] : memref<8x128xf32, #tpu.memory_space<vmem>>, vector<8x128xf32>
    %24 = arith.mulf %22, %23 : vector<8x128xf32>
    %25 = arith.addf %13, %24 : vector<8x128xf32>
    %26 = math.tanh %25 : vector<8x128xf32>
    %27 = arith.mulf %23, %23 : vector<8x128xf32>
    %cst_15 = arith.constant -5.000000e-01 : f32
    %28 = vector.broadcast %cst_15 : f32 to vector<8x128xf32>
    %29 = arith.mulf %28, %27 : vector<8x128xf32>
    %30 = math.log %22 : vector<8x128xf32>
    %31 = arith.subf %29, %30 : vector<8x128xf32>
    %32 = arith.mulf %26, %26 : vector<8x128xf32>
    %cst_16 = arith.constant 1.000000e+00 : f32
    %33 = vector.broadcast %cst_16 : f32 to vector<8x128xf32>
    %34 = arith.subf %33, %32 : vector<8x128xf32>
    %cst_17 = arith.constant 1.000000e-07 : f32
    %35 = vector.broadcast %cst_17 : f32 to vector<8x128xf32>
    %36 = arith.addf %34, %35 : vector<8x128xf32>
    %37 = math.log %36 : vector<8x128xf32>
    %38 = arith.subf %31, %37 : vector<8x128xf32>
    %cst_18 = arith.constant 1.6120857 : f32
    %39 = vector.broadcast %cst_18 : f32 to vector<8x128xf32>
    %40 = arith.subf %38, %39 : vector<8x128xf32>
    %cst_19 = arith.constant 2.000000e+00 : f32
    %41 = vector.broadcast %cst_19 : f32 to vector<8x128xf32>
    %42 = arith.mulf %26, %41 : vector<8x128xf32>
    %c0_20 = arith.constant 0 : index
    %c0_21 = arith.constant 0 : index
    %43 = vector.load %arg7[%c0_20, %c0_21] : memref<8x256xf32, #tpu.memory_space<vmem>>, vector<8x128xf32>
    tpu.vector_store %arg7[%c0_20, %c0_21], %42 {strides = array<i32>} : memref<8x256xf32, #tpu.memory_space<vmem>>, vector<8x128xf32>,
    %c0_22 = arith.constant 0 : index
    %c128 = arith.constant 128 : index
    %44 = vector.load %arg7[%c0_22, %c128] : memref<8x256xf32, #tpu.memory_space<vmem>>, vector<8x128xf32>
    tpu.vector_store %arg7[%c0_22, %c128], %40 {strides = array<i32>} : memref<8x256xf32, #tpu.memory_space<vmem>>, vector<8x128xf32>,
    return
  }
  func.func @transform_0(%arg0: i32) -> (i32, i32) {
    %c0_i32 = arith.constant 0 : i32
    %c0_i32_0 = arith.constant 0 : i32
    return %arg0, %c0_i32 : i32, i32
  }
  func.func @transform_1(%arg0: i32) -> (i32, i32) {
    %c0_i32 = arith.constant 0 : i32
    %c0_i32_0 = arith.constant 0 : i32
    %c0_i32_1 = arith.constant 0 : i32
    return %c0_i32, %c0_i32_0 : i32, i32
  }
  func.func @transform_2(%arg0: i32) -> (i32, i32) {
    %c0_i32 = arith.constant 0 : i32
    %c0_i32_0 = arith.constant 0 : i32
    %c0_i32_1 = arith.constant 0 : i32
    return %c0_i32, %c0_i32_0 : i32, i32
  }
  func.func @transform_3(%arg0: i32) -> (i32, i32) {
    %c0_i32 = arith.constant 0 : i32
    %c0_i32_0 = arith.constant 0 : i32
    %c0_i32_1 = arith.constant 0 : i32
    return %c0_i32, %c0_i32_0 : i32, i32
  }
  func.func @transform_4(%arg0: i32) -> (i32, i32) {
    %c0_i32 = arith.constant 0 : i32
    %c0_i32_0 = arith.constant 0 : i32
    %c0_i32_1 = arith.constant 0 : i32
    return %c0_i32, %c0_i32_0 : i32, i32
  }
  func.func @transform_5(%arg0: i32) -> (i32, i32) {
    %c0_i32 = arith.constant 0 : i32
    %c0_i32_0 = arith.constant 0 : i32
    return %arg0, %c0_i32 : i32, i32
  }
  func.func @transform_6(%arg0: i32) -> (i32, i32) {
    %c0_i32 = arith.constant 0 : i32
    %c0_i32_0 = arith.constant 0 : i32
    return %arg0, %c0_i32 : i32, i32
  }
}

</mosaic_0001>

<llo_original>
// kernel: tpu_custom_call.1
$region0: #{tpu_custom_call.1}
  #allocation0 [shape = 'u32[]', space=smem, size = 0x4, offset = 0x4, fixed_abs, tag = 'smem constant byte address 0x4 - core index']
  #allocation1 [shape = 'u32[144,128]{1,0:T(1,128)}', space=vmem, size = 0x12000, scoped, tag = 'internal scratch']
  %s0 = inlined_call_operand.hbm [shape: f32[8,16], index: 0, kind: input, shape index: {}]
  %s1 = inlined_call_operand.hbm [shape: f32[16,128], index: 1, kind: input, shape index: {}]
  %s2 = inlined_call_operand.vmem [shape: f32[1,128], index: 2, kind: input, shape index: {}]
  %s3 = inlined_call_operand.hbm [shape: f32[128,256], index: 3, kind: input, shape index: {}]
  %s4 = inlined_call_operand.vmem [shape: f32[1,256], index: 4, kind: input, shape index: {}]
  %s5 = inlined_call_operand.vmem [shape: f32[8,128], index: 5, kind: input, shape index: {}]
  %s6 = inlined_call_operand.hbm [shape: f32[8,256], index: 6, kind: output, shape index: {}]
  %s7 = sld [smem:[#allocation0]]
  $region46: #{tpu_custom_call.1} parent=0
    _
  %s9 = ssub.s32 1, %s7
  %s10 = scalar_select 0, %s9, %s7
  $region1: #{tpu_custom_call.1} parent=0
    #allocation2 [shape = 'u8[4096]{0}', space=vmem, size = 0x1000, scoped, tag = 'input window, operand 0, single buffered']
    #allocation3 [shape = 's32[1]{0}', space=sflag, size = 0x4, scoped, tag = 'scoped memory for tpu_custom_call.1']
    #allocation4 [shape = 's32[1]{0}', space=sflag, size = 0x4, scoped, tag = 'scoped memory for tpu_custom_call.1']
    #allocation5 [shape = 'u8[8192]{0}', space=vmem, size = 0x2000, scoped, tag = 'input window, operand 1, single buffered']
    #allocation6 [shape = 's32[1]{0}', space=sflag, size = 0x4, scoped, tag = 'scoped memory for tpu_custom_call.1']
    #allocation7 [shape = 'u8[131072]{0}', space=vmem, size = 0x20000, scoped, tag = 'input window, operand 3, single buffered']
    #allocation8 [shape = 'u8[8192]{0}', space=vmem, size = 0x2000, scoped, tag = 'output window, operand 0, single buffered']
    %11 = vsyncpa [#allocation3], 0
    %12 = vsyncpa [#allocation6], 0
    %13 = vsyncpa [#allocation4], 0
    // Predicated region
    $region2: #{tpu_custom_call.1} parent=1 // pred_check
      _
    $region3: #{tpu_custom_call.1} parent=1 // pred_check_branch
      %15 = sbr.rel (0) target = $region5
    $region4: #{tpu_custom_call.1} parent=1 // pred_region
      %s17 = ssub.s32 128, 128
      %18 = vsyncadd [#allocation3], %s17
      %s20 = sshll.u32 [#allocation2], 4
      %s21 = int_to_ptr.vmem [resolvable:$true] %s20
      %23 = dma.hbm_to_vmem [thread:$0]  %s0, 128, %s21, [#allocation3]
    $region5: #{tpu_custom_call.1} parent=1 // pred_fallthru
      _
    // Predicated region
    $region6: #{tpu_custom_call.1} parent=1 // pred_check
      _
    $region7: #{tpu_custom_call.1} parent=1 // pred_check_branch
      %25 = sbr.rel (0) target = $region9
    $region8: #{tpu_custom_call.1} parent=1 // pred_region
      %s27 = ssub.s32 256, 256
      %28 = vsyncadd [#allocation6], %s27
      %s29 = sshll.u32 [#allocation5], 4
      %s30 = int_to_ptr.vmem [resolvable:$true] %s29
      %35 = dma.hbm_to_vmem [thread:$0]  %s1, 256, %s30, [#allocation6], 128, 128, 8
    $region9: #{tpu_custom_call.1} parent=1 // pred_fallthru
      _
    // Predicated region
    $region10: #{tpu_custom_call.1} parent=1 // pred_check
      _
    $region11: #{tpu_custom_call.1} parent=1 // pred_check_branch
      %37 = sbr.rel (0) target = $region13
    $region12: #{tpu_custom_call.1} parent=1 // pred_region
      _
    $region13: #{tpu_custom_call.1} parent=1 // pred_fallthru
      _
    // Predicated region
    $region14: #{tpu_custom_call.1} parent=1 // pred_check
      _
    $region15: #{tpu_custom_call.1} parent=1 // pred_check_branch
      %39 = sbr.rel (0) target = $region17
    $region16: #{tpu_custom_call.1} parent=1 // pred_region
      %s41 = ssub.s32 4096, 4096
      %42 = vsyncadd [#allocation6], %s41
      %s43 = sshll.u32 [#allocation7], 4
      %s44 = int_to_ptr.vmem [resolvable:$true] %s43
      %49 = dma.hbm_to_vmem [thread:$0]  %s3, 4096, %s44, [#allocation6], 256, 256, 16
    $region17: #{tpu_custom_call.1} parent=1 // pred_fallthru
      _
    // Predicated region
    $region18: #{tpu_custom_call.1} parent=1 // pred_check
      _
    $region19: #{tpu_custom_call.1} parent=1 // pred_check_branch
      %51 = sbr.rel (0) target = $region21
    $region20: #{tpu_custom_call.1} parent=1 // pred_region
      _
    $region21: #{tpu_custom_call.1} parent=1 // pred_fallthru
      _
    // Predicated region
    $region22: #{tpu_custom_call.1} parent=1 // pred_check
      _
    $region23: #{tpu_custom_call.1} parent=1 // pred_check_branch
      %53 = sbr.rel (0) target = $region25
    $region24: #{tpu_custom_call.1} parent=1 // pred_region
      _
    $region25: #{tpu_custom_call.1} parent=1 // pred_fallthru
      _
    // Predicated region
    $region26: #{tpu_custom_call.1} parent=1 // pred_check
      _
    $region27: #{tpu_custom_call.1} parent=1 // pred_check_branch
      %55 = sbr.rel (0) target = $region29
    $region28: #{tpu_custom_call.1} parent=1 // pred_region
      %56 = dma.done [#allocation3], 128
    $region29: #{tpu_custom_call.1} parent=1 // pred_fallthru
      _
    // Predicated region
    $region30: #{tpu_custom_call.1} parent=1 // pred_check
      _
    $region31: #{tpu_custom_call.1} parent=1 // pred_check_branch
      %58 = sbr.rel (0) target = $region33
    $region32: #{tpu_custom_call.1} parent=1 // pred_region
      %59 = dma.done [#allocation6], 256
    $region33: #{tpu_custom_call.1} parent=1 // pred_fallthru
      _
    // Predicated region
    $region34: #{tpu_custom_call.1} parent=1 // pred_check
      _
    $region35: #{tpu_custom_call.1} parent=1 // pred_check_branch
      %61 = sbr.rel (0) target = $region37
    $region36: #{tpu_custom_call.1} parent=1 // pred_region
      %62 = dma.done [#allocation6], 4096
    $region37: #{tpu_custom_call.1} parent=1 // pred_fallthru
      _
    %v63 = vld [vmem:[#allocation2] sm:$0xff]
    %v64 = vld [vmem:[#allocation5] sm:$0xff]
    %v65 = vld [vmem:[#allocation5 + $0x8] sm:$0xff]
    %v66 = vld [vmem:[%s2] sm:$0x1]
    %v68 = vlaneseq
    %v69 = vshrl.u32 %v68, 7
    %v70 = vsub.s32 0, %v69
    %v71 = vrot.slane %v66, %v70
    %vm73 = vcmask 130048
    %v75 = vsel %vm73, %v63, 0
    %77 = vmatprep.subr.mxu0 0.0
    %78 = vmatpush1.msra.mxu0 %v64
    %79 = vmatprep.subr.mxu0 0.0
    %80 = vmatpush1.msra.mxu0 %v65
    %81 = vmatprep.subr.mxu0 0.0
    %82 = vmatpush1.msra.mxu0 0.0
    %83 = vmatprep.subr.mxu0 0.0
    %84 = vmatpush1.msra.mxu0 0.0
    %85 = vmatprep.subr.mxu0 0.0
    %86 = vmatpush1.msra.mxu0 0.0
    %87 = vmatprep.subr.mxu0 0.0
    %88 = vmatpush1.msra.mxu0 0.0
    %89 = vmatprep.subr.mxu0 0.0
    %90 = vmatpush1.msra.mxu0 0.0
    %91 = vmatprep.subr.mxu0 0.0
    %92 = vmatpush1.msra.mxu0 0.0
    %93 = vmatprep.subr.mxu0 0.0
    %94 = vmatpush1.msra.mxu0 0.0
    %95 = vmatprep.subr.mxu0 0.0
    %96 = vmatpush1.msra.mxu0 0.0
    %97 = vmatprep.subr.mxu0 0.0
    %98 = vmatpush1.msra.mxu0 0.0
    %99 = vmatprep.subr.mxu0 0.0
    %100 = vmatpush1.msra.mxu0 0.0
    %101 = vmatprep.subr.mxu0 0.0
    %102 = vmatpush1.msra.mxu0 0.0
    %103 = vmatprep.subr.mxu0 0.0
    %104 = vmatpush1.msra.mxu0 0.0
    %105 = vmatprep.subr.mxu0 0.0
    %106 = vmatpush1.msra.mxu0 0.0
    %107 = vmatprep.subr.mxu0 0.0
    %108 = vmatpush1.msra.mxu0 0.0
    %109 = vmatprep.subr.mxu0 0.0
    %110 = vmatpush1.msra.mxu0 0.0
    %111 = vmatprep.subr.mxu0 0.0
    %112 = vmatpush1.msra.mxu0 0.0
    %113 = vmatprep.subr.mxu0 0.0
    %114 = vmatpush1.msra.mxu0 0.0
    %115 = vmatprep.subr.mxu0 0.0
    %116 = vmatpush1.msra.mxu0 0.0
    %117 = vmatprep.subr.mxu0 0.0
    %118 = vmatpush1.msra.mxu0 0.0
    %119 = vmatprep.subr.mxu0 0.0
    %120 = vmatpush1.msra.mxu0 0.0
    %121 = vmatprep.subr.mxu0 0.0
    %122 = vmatpush1.msra.mxu0 0.0
    %123 = vmatprep.subr.mxu0 0.0
    %124 = vmatpush1.msra.mxu0 0.0
    %125 = vmatprep.subr.mxu0 0.0
    %126 = vmatpush1.msra.mxu0 0.0
    %127 = vmatprep.subr.mxu0 0.0
    %128 = vmatpush1.msra.mxu0 0.0
    %129 = vmatprep.subr.mxu0 0.0
    %130 = vmatpush1.msra.mxu0 0.0
    %131 = vmatprep.subr.mxu0 0.0
    %132 = vmatpush1.msra.mxu0 0.0
    %133 = vmatprep.subr.mxu0 0.0
    %134 = vmatpush1.msra.mxu0 0.0
    %135 = vmatprep.subr.mxu0 0.0
    %136 = vmatpush1.msra.mxu0 0.0
    %137 = vmatprep.subr.mxu0 0.0
    %138 = vmatpush1.msra.mxu0 0.0
    %139 = vmatprep.subr.mxu0 0.0
    %140 = vmatpush1.msra.mxu0 0.0
    %141 = vmatprep.mubr.f32.mxu0 0.0
    %142 = vmatmul.mubr.f32.gmra.mrb[0].mxu0 %v75
    %v143 = vpop.f32.mrb[0].mxu0
    %v144 = vadd.f32 %v71, %v143
    %v145 = vpop.f32.mrb[0].mxu0
    %146 = vdwg.mxu0
    %v147 = vmax.f32 %v144, 0.0
    %v148 = vld [vmem:[#allocation7] sm:$0xff]
    %v149 = vld [vmem:[#allocation7 + $0x8] sm:$0xff]
    %v150 = vld [vmem:[#allocation7 + $0x10] sm:$0xff]
    %v151 = vld [vmem:[#allocation7 + $0x18] sm:$0xff]
    %v152 = vld [vmem:[#allocation7 + $0x20] sm:$0xff]
    %v153 = vld [vmem:[#allocation7 + $0x28] sm:$0xff]
    %v154 = vld [vmem:[#allocation7 + $0x30] sm:$0xff]
    %v155 = vld [vmem:[#allocation7 + $0x38] sm:$0xff]
    %v156 = vld [vmem:[#allocation7 + $0x40] sm:$0xff]
    %v157 = vld [vmem:[#allocation7 + $0x48] sm:$0xff]
    %v158 = vld [vmem:[#allocation7 + $0x50] sm:$0xff]
    %v159 = vld [vmem:[#allocation7 + $0x58] sm:$0xff]
    %v160 = vld [vmem:[#allocation7 + $0x60] sm:$0xff]
    %v161 = vld [vmem:[#allocation7 + $0x68] sm:$0xff]
    %v162 = vld [vmem:[#allocation7 + $0x70] sm:$0xff]
    %v163 = vld [vmem:[#allocation7 + $0x78] sm:$0xff]
    %v164 = vld [vmem:[#allocation7 + $0x80] sm:$0xff]
    %v165 = vld [vmem:[#allocation7 + $0x88] sm:$0xff]
    %v166 = vld [vmem:[#allocation7 + $0x90] sm:$0xff]
    %v167 = vld [vmem:[#allocation7 + $0x98] sm:$0xff]
    %v168 = vld [vmem:[#allocation7 + $0xa0] sm:$0xff]
    %v169 = vld [vmem:[#allocation7 + $0xa8] sm:$0xff]
    %v170 = vld [vmem:[#allocation7 + $0xb0] sm:$0xff]
    %v171 = vld [vmem:[#allocation7 + $0xb8] sm:$0xff]
    %v172 = vld [vmem:[#allocation7 + $0xc0] sm:$0xff]
    %v173 = vld [vmem:[#allocation7 + $0xc8] sm:$0xff]
    %v174 = vld [vmem:[#allocation7 + $0xd0] sm:$0xff]
    %v175 = vld [vmem:[#allocation7 + $0xd8] sm:$0xff]
    %v176 = vld [vmem:[#allocation7 + $0xe0] sm:$0xff]
    %v177 = vld [vmem:[#allocation7 + $0xe8] sm:$0xff]
    %v178 = vld [vmem:[#allocation7 + $0xf0] sm:$0xff]
    %v179 = vld [vmem:[#allocation7 + $0xf8] sm:$0xff]
    %v180 = vld [vmem:[%s4] sm:$0x3]
    %v182 = vlaneseq
    %v183 = vshrl.u32 %v182, 7
    %v184 = vsub.s32 0, %v183
    %v185 = vrot.slane %v180, %v184
    %v186 = vlaneseq
    %v187 = vshrl.u32 %v186, 7
    %v188 = vsub.s32 1, %v187
    %v189 = vrot.slane %v180, %v188
    %192 = vmatprep.subr.mxu0 %v149
    %193 = vmatpush1.msra.mxu0 %v148
    %194 = vmatprep.subr.mxu0 %v151
    %195 = vmatpush1.msra.mxu0 %v150
    %196 = vmatprep.subr.mxu0 %v153
    %197 = vmatpush1.msra.mxu0 %v152
    %198 = vmatprep.subr.mxu0 %v155
    %199 = vmatpush1.msra.mxu0 %v154
    %200 = vmatprep.subr.mxu0 %v157
    %201 = vmatpush1.msra.mxu0 %v156
    %202 = vmatprep.subr.mxu0 %v159
    %203 = vmatpush1.msra.mxu0 %v158
    %204 = vmatprep.subr.mxu0 %v161
    %205 = vmatpush1.msra.mxu0 %v160
    %206 = vmatprep.subr.mxu0 %v163
    %207 = vmatpush1.msra.mxu0 %v162
    %208 = vmatprep.subr.mxu0 %v165
    %209 = vmatpush1.msra.mxu0 %v164
    %210 = vmatprep.subr.mxu0 %v167
    %211 = vmatpush1.msra.mxu0 %v166
    %212 = vmatprep.subr.mxu0 %v169
    %213 = vmatpush1.msra.mxu0 %v168
    %214 = vmatprep.subr.mxu0 %v171
    %215 = vmatpush1.msra.mxu0 %v170
    %216 = vmatprep.subr.mxu0 %v173
    %217 = vmatpush1.msra.mxu0 %v172
    %218 = vmatprep.subr.mxu0 %v175
    %219 = vmatpush1.msra.mxu0 %v174
    %220 = vmatprep.subr.mxu0 %v177
    %221 = vmatpush1.msra.mxu0 %v176
    %222 = vmatprep.subr.mxu0 %v179
    %223 = vmatpush1.msra.mxu0 %v178
    %224 = vmatprep.subr.mxu0 0.0
    %225 = vmatpush1.msra.mxu0 0.0
    %226 = vmatprep.subr.mxu0 0.0
    %227 = vmatpush1.msra.mxu0 0.0
    %228 = vmatprep.subr.mxu0 0.0
    %229 = vmatpush1.msra.mxu0 0.0
    %230 = vmatprep.subr.mxu0 0.0
    %231 = vmatpush1.msra.mxu0 0.0
    %232 = vmatprep.subr.mxu0 0.0
    %233 = vmatpush1.msra.mxu0 0.0
    %234 = vmatprep.subr.mxu0 0.0
    %235 = vmatpush1.msra.mxu0 0.0
    %236 = vmatprep.subr.mxu0 0.0
    %237 = vmatpush1.msra.mxu0 0.0
    %238 = vmatprep.subr.mxu0 0.0
    %239 = vmatpush1.msra.mxu0 0.0
    %240 = vmatprep.subr.mxu0 0.0
    %241 = vmatpush1.msra.mxu0 0.0
    %242 = vmatprep.subr.mxu0 0.0
    %243 = vmatpush1.msra.mxu0 0.0
    %244 = vmatprep.subr.mxu0 0.0
    %245 = vmatpush1.msra.mxu0 0.0
    %246 = vmatprep.subr.mxu0 0.0
    %247 = vmatpush1.msra.mxu0 0.0
    %248 = vmatprep.subr.mxu0 0.0
    %249 = vmatpush1.msra.mxu0 0.0
    %250 = vmatprep.subr.mxu0 0.0
    %251 = vmatpush1.msra.mxu0 0.0
    %252 = vmatprep.subr.mxu0 0.0
    %253 = vmatpush1.msra.mxu0 0.0
    %254 = vmatprep.subr.mxu0 0.0
    %255 = vmatpush1.msra.mxu0 0.0
    %256 = vmatprep.mubr.f32.mxu0 0.0
    %257 = vmatmul.mubr.f32.gmra.mrb[0].mxu0 %v147
    %v258 = vpop.f32.mrb[0].mxu0
    %v259 = vadd.f32 %v185, %v258
    %v260 = vpop.f32.mrb[0].mxu0
    %v261 = vadd.f32 %v189, %v260
    %262 = vdwg.mxu0
    %v263 = vmax.f32 %v261, 0.0
    %v264 = vand.u32 2147483647, %v261
    %v265 = vsub.f32 0.0, %v264
    %v266 = vmul.f32 %v265, 1.442695
    %v267 = vpow.pop %v266
    %v268 = vadd.f32 %v267, 1.0
    %v269 = vlog2.pop %v268
    %v270 = vmul.f32 %v269, 0.6931472
    %v271 = vmul.f32 -0.5, %v267
    %v272 = vadd.f32 %v271, 1.0
    %v273 = vmul.f32 %v272, %v267
    %v274 = vand.u32 2147483647, %v267
    %vm275 = vcmp.lt.f32.partialorder %v274, 0.0004427343
    %v276 = vsel %vm275, %v273, %v270
    %v277 = vadd.f32 %v263, %v276
    %v278 = vld [vmem:[%s5] sm:$0xff]
    %v279 = vmul.f32 %v277, %v278
    %v280 = vadd.f32 %v259, %v279
    %v281 = vtanh.pop %v280
    %v282 = vmul.f32 %v278, %v278
    %v283 = vmul.f32 %v282, -0.5
    %v284 = vlog2.pop %v277
    %v285 = vmul.f32 %v284, 0.6931472
    %v286 = vsub.f32 %v283, %v285
    %v287 = vmul.f32 %v281, %v281
    %v288 = vsub.f32 1.0, %v287
    %v289 = vadd.f32 %v288, 1e-07
    %v290 = vlog2.pop %v289
    %v291 = vmul.f32 %v290, 0.6931472
    %v292 = vsub.f32 %v286, %v291
    %v293 = vsub.f32 %v292, 1.6120857
    %v294 = vmul.f32 %v281, 2.0
    %295 = vst [vmem:[#allocation8] sm:$0xff] %v294
    %296 = vst [vmem:[#allocation8 + $0x8] sm:$0xff] %v293
    // Predicated region
    $region38: #{tpu_custom_call.1} parent=1 // pred_check
      _
    $region39: #{tpu_custom_call.1} parent=1 // pred_check_branch
      %298 = sbr.rel (0) target = $region41
    $region40: #{tpu_custom_call.1} parent=1 // pred_region
      %s300 = ssub.s32 256, 256
      %301 = vsyncadd [#allocation4], %s300
      %s303 = sshll.u32 [#allocation8], 4
      %s304 = int_to_ptr.vmem [resolvable:$true] %s303
      %306 = dma.vmem_to_hbm [thread:$0]  %s304, 256, %s6, [#allocation4]
    $region41: #{tpu_custom_call.1} parent=1 // pred_fallthru
      _
    // Predicated region
    $region42: #{tpu_custom_call.1} parent=1 // pred_check
      _
    $region43: #{tpu_custom_call.1} parent=1 // pred_check_branch
      %308 = sbr.rel (0) target = $region45
    $region44: #{tpu_custom_call.1} parent=1 // pred_region
      %309 = dma.done [#allocation4], 256
    $region45: #{tpu_custom_call.1} parent=1 // pred_fallthru
      _
    %310 = vsyncpa [#allocation3], 1
    %311 = vsyncpa [#allocation6], 1
    %312 = vsyncpa [#allocation4], 1

</llo_original>
